<compile_context>
chip_gen: v5e
topology: v5e:2x2
jax: 0.10.0
libtpu: 0.0.40
codegen_flags: <defaults>
</compile_context>

<pallas_src>
import jax
import jax.numpy as jnp
from jax.experimental import pallas as pl
from jax.experimental.pallas import tpu as pltpu

CLUSTERING = 15          # number of clusters, as in the PyTorch module
_LANE = 128              # TPU vreg lane width
_SUBLANE = 8             # TPU vreg sublane width (f32)
_FAR = 1e18              # padding "cluster center": 1/d2 ~ 1e-36 (negligible)
_DEFAULT_TILE_LANES = 32768   # ~4.5 MiB per grid step incl. double buffers


def _clustering_kernel(data_t_ref, pred_ref, out_ref):
    # data_t_ref: (2, tn)      row 0 = x coords, row 1 = y coords (points on lanes)
    # pred_ref:   (C_pad, 2)   cluster centers (clusters on sublanes), VMEM-resident
    # out_ref:    (C_pad, tn)  membership probabilities, lane-dense
    x = data_t_ref[0:1, :]            # (1, tn)
    y = data_t_ref[1:2, :]            # (1, tn)
    px = pred_ref[:, 0:1]             # (C_pad, 1)
    py = pred_ref[:, 1:2]             # (C_pad, 1)

    dx = px - x                       # (C_pad, tn) broadcast
    dy = py - y
    d2 = dx * dx + dy * dy            # squared distance; sqrt fused away

    # 1/d2 via EUP approx reciprocal + one Newton step (~full f32 accuracy):
    r0 = pl.reciprocal(d2, approx=True)
    r2 = r0 * (2.0 - d2 * r0)         # == reciprocal(distance) ** 2

    # F.normalize(recip, dim=-1) ** 2  ==  r2 / max(sum_c r2, eps^2)
    s = jnp.maximum(jnp.sum(r2, axis=0, keepdims=True), 1e-24)   # (1, tn)
    i0 = pl.reciprocal(s, approx=True)
    inv = i0 * (2.0 - s * i0)

    out_ref[...] = r2 * inv


def net_forward_cn(data, pred, *, tile_lanes=_DEFAULT_TILE_LANES):
    """Lane-dense forward: data (N, 2), pred (C, 2) -> prob (C, N) f32.

    Prefer this layout downstream; `net_forward` adds the (N, C) transpose.
    """
    N = data.shape[0]
    C = pred.shape[0]
    c_pad = pl.cdiv(C, _SUBLANE) * _SUBLANE            # 15 -> 16

    # Fixed, lane-aligned tile; many grid steps for pipelining + megacore.
    tn = min(tile_lanes, pl.cdiv(N, _LANE) * _LANE)
    tn = pl.cdiv(tn, _LANE) * _LANE
    n_pad = pl.cdiv(N, tn) * tn
    steps = n_pad // tn

    data_t = jnp.pad(data.astype(jnp.float32).T, ((0, 0), (0, n_pad - N)))
    pred_pad = jnp.pad(pred.astype(jnp.float32),
                       ((0, c_pad - C), (0, 0)), constant_values=_FAR)

    out_cn = pl.pallas_call(
        _clustering_kernel,
        out_shape=jax.ShapeDtypeStruct((c_pad, n_pad), jnp.float32),
        grid=(steps,),
        in_specs=[
            pl.BlockSpec((2, tn), lambda i: (0, i)),       # data tile, N on lanes
            pl.BlockSpec((c_pad, 2), lambda i: (0, 0)),    # full pred, resident
        ],
        out_specs=pl.BlockSpec((c_pad, tn), lambda i: (0, i)),
        compiler_params=pltpu.CompilerParams(
            dimension_semantics=("parallel",)),
    )(data_t, pred_pad)

    return out_cn[:C, :N]


def net_forward(data, pred, *, tile_lanes=_DEFAULT_TILE_LANES):
    """Module-shaped forward: (N, C).  The transpose re-reads/re-writes the
    whole output; fuse it into the consumer (or use net_forward_cn) when
    end-to-end HBM traffic matters."""
    return net_forward_cn(data, pred, tile_lanes=tile_lanes).T


def net_forward_ref(data, pred):
    # plain-JAX reference mirroring the PyTorch forward literally
    diff = pred[None, :, :] - data[:, None, :]                 # (N, C, 2)
    dist = jnp.sqrt(jnp.sum(diff * diff, axis=-1))             # (N, C)
    recip = 1.0 / dist
    norm = jnp.sqrt(jnp.sum(recip * recip, axis=-1, keepdims=True))
    return (recip / jnp.maximum(norm, 1e-12)) ** 2


if __name__ == "__main__":
    key = jax.random.PRNGKey(0)
    k_data, k_pred = jax.random.split(key)

    # Synthetic stand-in for `numpy.loadtxt('s2.txt') / 1e6` (values ~ [0, 1)).
    # N deliberately NOT a multiple of the tile to exercise the padding path.
    N = 200
    data = jax.random.uniform(k_data, (N, 2), dtype=jnp.float32)

    # Parameter init as in __init__: normal(mean=data.mean(0), std=0.01)
    pred = (data.mean(axis=0)[None, :]
            + 0.01 * jax.random.normal(k_pred, (CLUSTERING, 2),
                                       dtype=jnp.float32))

    ref = net_forward_ref(data, pred)

    # 1) default tiling (single tile at this toy size)
    prob_cn = net_forward_cn(data, pred)
    jax.block_until_ready(prob_cn)
    assert prob_cn.shape == (CLUSTERING, N)
    assert jnp.allclose(prob_cn, ref.T, atol=1e-5, rtol=1e-5)

    # 2) small tile -> multi-step grid, exercises pipelining + tail padding
    prob = net_forward(data, pred, tile_lanes=128)
    jax.block_until_ready(prob)
    assert prob.shape == (N, CLUSTERING)
    assert jnp.allclose(prob, ref, atol=1e-5, rtol=1e-5)

    print("KERNEL_OK")
</pallas_src>

<mosaic_0001>
module attributes {stable_mosaic.version = 11 : i64} {
  func.func @_clustering_kernel(%arg0: i32, %arg1: memref<2x256xf32, #tpu.memory_space<vmem>>, %arg2: memref<16x2xf32, #tpu.memory_space<vmem>>, %arg3: memref<16x256xf32, #tpu.memory_space<vmem>>) attributes {dimension_semantics = [#tpu.dimension_semantics<parallel>], iteration_bounds = array<i64: 1>, scalar_prefetch = 0 : i64, scratch_operands = 0 : i64, tpu.core_type = #tpu.core_type<tc>, window_params = [{transform_indices = @transform_0, window_bounds = array<i64: 2, 256>}, {pipeline_mode = #tpu.pipeline_mode<synchronous>, transform_indices = @transform_1, window_bounds = array<i64: 16, 2>}, {transform_indices = @transform_2, window_bounds = array<i64: 16, 256>}]} {
    %c0 = arith.constant 0 : index
    %c0_0 = arith.constant 0 : index
    %0 = vector.load %arg1[%c0, %c0_0] : memref<2x256xf32, #tpu.memory_space<vmem>>, vector<1x256xf32>
    %c1 = arith.constant 1 : index
    %c0_1 = arith.constant 0 : index
    %1 = vector.load %arg1[%c1, %c0_1] : memref<2x256xf32, #tpu.memory_space<vmem>>, vector<1x256xf32>
    %c0_2 = arith.constant 0 : index
    %c0_3 = arith.constant 0 : index
    %2 = vector.load %arg2[%c0_2, %c0_3] : memref<16x2xf32, #tpu.memory_space<vmem>>, vector<16x1xf32>
    %c0_4 = arith.constant 0 : index
    %c1_5 = arith.constant 1 : index
    %3 = vector.load %arg2[%c0_4, %c1_5] : memref<16x2xf32, #tpu.memory_space<vmem>>, vector<16x1xf32>
    %4 = vector.broadcast %2 : vector<16x1xf32> to vector<16x256xf32>
    %5 = vector.broadcast %0 : vector<1x256xf32> to vector<16x256xf32>
    %6 = arith.subf %4, %5 : vector<16x256xf32>
    %7 = vector.broadcast %3 : vector<16x1xf32> to vector<16x256xf32>
    %8 = vector.broadcast %1 : vector<1x256xf32> to vector<16x256xf32>
    %9 = arith.subf %7, %8 : vector<16x256xf32>
    %10 = arith.mulf %6, %6 : vector<16x256xf32>
    %11 = arith.mulf %9, %9 : vector<16x256xf32>
    %12 = arith.addf %10, %11 : vector<16x256xf32>
    %13 = tpu.reciprocal %12 {approx = true} : vector<16x256xf32> -> vector<16x256xf32>
    %14 = arith.mulf %12, %13 : vector<16x256xf32>
    %cst = arith.constant 2.000000e+00 : f32
    %15 = vector.broadcast %cst : f32 to vector<16x256xf32>
    %16 = arith.subf %15, %14 : vector<16x256xf32>
    %17 = arith.mulf %13, %16 : vector<16x256xf32>
    %cst_6 = arith.constant dense<0.000000e+00> : vector<256xf32>
    %18 = vector.multi_reduction <add>, %17, %cst_6 [0] : vector<16x256xf32> to vector<256xf32>
    %19 = vector.shape_cast %18 : vector<256xf32> to vector<1x256xf32>
    %cst_7 = arith.constant 1.000000e-24 : f32
    %20 = vector.broadcast %cst_7 : f32 to vector<1x256xf32>
    %21 = arith.maximumf %19, %20 : vector<1x256xf32>
    %22 = tpu.reciprocal %21 {approx = true} : vector<1x256xf32> -> vector<1x256xf32>
    %23 = arith.mulf %21, %22 : vector<1x256xf32>
    %cst_8 = arith.constant 2.000000e+00 : f32
    %24 = vector.broadcast %cst_8 : f32 to vector<1x256xf32>
    %25 = arith.subf %24, %23 : vector<1x256xf32>
    %26 = arith.mulf %22, %25 : vector<1x256xf32>
    %27 = vector.broadcast %26 : vector<1x256xf32> to vector<16x256xf32>
    %28 = arith.mulf %17, %27 : vector<16x256xf32>
    %c0_9 = arith.constant 0 : index
    %c0_10 = arith.constant 0 : index
    %29 = vector.load %arg3[%c0_9, %c0_10] : memref<16x256xf32, #tpu.memory_space<vmem>>, vector<16x256xf32>
    tpu.vector_store %arg3[%c0_9, %c0_10], %28 {strides = array<i32>} : memref<16x256xf32, #tpu.memory_space<vmem>>, vector<16x256xf32>,
    return
  }
  func.func @transform_0(%arg0: i32) -> (i32, i32) {
    %c0_i32 = arith.constant 0 : i32
    %c0_i32_0 = arith.constant 0 : i32
    return %c0_i32, %arg0 : i32, i32
  }
  func.func @transform_1(%arg0: i32) -> (i32, i32) {
    %c0_i32 = arith.constant 0 : i32
    %c0_i32_0 = arith.constant 0 : i32
    %c0_i32_1 = arith.constant 0 : i32
    return %c0_i32, %c0_i32_0 : i32, i32
  }
  func.func @transform_2(%arg0: i32) -> (i32, i32) {
    %c0_i32 = arith.constant 0 : i32
    %c0_i32_0 = arith.constant 0 : i32
    return %c0_i32, %arg0 : i32, i32
  }
}

</mosaic_0001>

<llo_original>
// kernel: tpu_custom_call.1
$region0: #{tpu_custom_call.1}
  #allocation0 [shape = 'u32[]', space=smem, size = 0x4, offset = 0x4, fixed_abs, tag = 'smem constant byte address 0x4 - core index']
  #allocation1 [shape = 'u32[72,128]{1,0:T(1,128)}', space=vmem, size = 0x9000, scoped, tag = 'internal scratch']
  %s0 = inlined_call_operand.vmem [shape: f32[2,256], index: 0, kind: input, shape index: {}]
  %s1 = inlined_call_operand.vmem [shape: f32[16,2], index: 1, kind: input, shape index: {}]
  %s2 = inlined_call_operand.hbm [shape: f32[16,256], index: 2, kind: output, shape index: {}]
  %s3 = sld [smem:[#allocation0]]
  $region18: #{tpu_custom_call.1} parent=0
    _
  %s5 = ssub.s32 1, %s3
  %s6 = scalar_select 0, %s5, %s3
  $region1: #{tpu_custom_call.1} parent=0
    #allocation2 [shape = 'u8[16384]{0}', space=vmem, size = 0x4000, scoped, tag = 'output window, operand 0, single buffered']
    #allocation3 [shape = 's32[1]{0}', space=sflag, size = 0x4, scoped, tag = 'scoped memory for tpu_custom_call.1']
    %7 = vsyncpa [#allocation3], 0
    // Predicated region
    $region2: #{tpu_custom_call.1} parent=1 // pred_check
      _
    $region3: #{tpu_custom_call.1} parent=1 // pred_check_branch
      %9 = sbr.rel (0) target = $region5
    $region4: #{tpu_custom_call.1} parent=1 // pred_region
      _
    $region5: #{tpu_custom_call.1} parent=1 // pred_fallthru
      _
    // Predicated region
    $region6: #{tpu_custom_call.1} parent=1 // pred_check
      _
    $region7: #{tpu_custom_call.1} parent=1 // pred_check_branch
      %11 = sbr.rel (0) target = $region9
    $region8: #{tpu_custom_call.1} parent=1 // pred_region
      _
    $region9: #{tpu_custom_call.1} parent=1 // pred_fallthru
      _
    %v12 = vld [vmem:[%s0] ss:$2 sm:$0x3]
    %s13 = scalar_lea.vmem %s0, 1
    %v14 = vld [vmem:[%s13] ss:$2 sm:$0x3]
    %v15 = vld [vmem:[%s1] sm:$0xff]
    %v16 = vld [vmem:[%s1 + $0x8] sm:$0xff]
    %18 = vset.pattern.permute.xlu0 0
    %19 = vperm.xlu0 %18, %v15
    %v20 = vpop.permute.xlu0 %19
    %23 = vset.pattern.permute.xlu0 0
    %24 = vperm.xlu0 %23, %v16
    %v25 = vpop.permute.xlu0 %24
    %v28 = vperm.slane %v12, 0
    %v29 = vperm.slane %v12, 1
    %v32 = vsub.f32 %v20, %v28
    %v33 = vsub.f32 %v20, %v29
    %v34 = vsub.f32 %v25, %v28
    %v35 = vsub.f32 %v25, %v29
    %36 = vset.pattern.permute.xlu0 1
    %37 = vperm.xlu0 %36, %v15
    %v38 = vpop.permute.xlu0 %37
    %40 = vset.pattern.permute.xlu0 1
    %41 = vperm.xlu0 %40, %v16
    %v42 = vpop.permute.xlu0 %41
    %v45 = vperm.slane %v14, 0
    %v46 = vperm.slane %v14, 1
    %v49 = vsub.f32 %v38, %v45
    %v50 = vsub.f32 %v38, %v46
    %v51 = vsub.f32 %v42, %v45
    %v52 = vsub.f32 %v42, %v46
    %v53 = vmul.f32 %v32, %v32
    %v54 = vmul.f32 %v33, %v33
    %v55 = vmul.f32 %v34, %v34
    %v56 = vmul.f32 %v35, %v35
    %v57 = vmul.f32 %v49, %v49
    %v58 = vmul.f32 %v50, %v50
    %v59 = vmul.f32 %v51, %v51
    %v60 = vmul.f32 %v52, %v52
    %v61 = vadd.f32 %v53, %v57
    %v62 = vadd.f32 %v54, %v58
    %v63 = vadd.f32 %v55, %v59
    %v64 = vadd.f32 %v56, %v60
    %v65 = vrcp.pop %v61
    %v66 = vrcp.pop %v62
    %v67 = vrcp.pop %v63
    %v68 = vrcp.pop %v64
    %v69 = vmul.f32 %v61, %v65
    %v70 = vmul.f32 %v62, %v66
    %v71 = vmul.f32 %v63, %v67
    %v72 = vmul.f32 %v64, %v68
    %v73 = vsub.f32 2.0, %v69
    %v74 = vsub.f32 2.0, %v70
    %v75 = vsub.f32 2.0, %v71
    %v76 = vsub.f32 2.0, %v72
    %v77 = vmul.f32 %v65, %v73
    %v78 = vmul.f32 %v66, %v74
    %v79 = vmul.f32 %v67, %v75
    %v80 = vmul.f32 %v68, %v76
    %v81 = vadd.f32 %v77, %v79
    %v82 = vrot.slane %v81, 4
    %v83 = vadd.f32 %v81, %v82
    %v84 = vrot.slane %v83, 2
    %v85 = vadd.f32 %v83, %v84
    %v86 = vrot.slane %v85, 1
    %v87 = vadd.f32 %v85, %v86
    %v88 = vadd.f32 %v78, %v80
    %v89 = vrot.slane %v88, 4
    %v90 = vadd.f32 %v88, %v89
    %v91 = vrot.slane %v90, 2
    %v92 = vadd.f32 %v90, %v91
    %v93 = vrot.slane %v92, 1
    %v94 = vadd.f32 %v92, %v93
    %v95 = vmax.f32 %v87, 1e-24
    %v96 = vmax.f32 %v94, 1e-24
    %v97 = vrcp.pop %v95
    %v98 = vrcp.pop %v96
    %v99 = vmul.f32 %v95, %v97
    %v100 = vmul.f32 %v96, %v98
    %v101 = vsub.f32 2.0, %v99
    %v102 = vsub.f32 2.0, %v100
    %v103 = vmul.f32 %v97, %v101
    %v104 = vmul.f32 %v98, %v102
    %v105 = vmul.f32 %v77, %v103
    %v106 = vmul.f32 %v78, %v104
    %v107 = vmul.f32 %v79, %v103
    %v108 = vmul.f32 %v80, %v104
    %109 = vst [vmem:[#allocation2] sm:$0xff] %v105
    %110 = vst [vmem:[#allocation2 + $0x8] sm:$0xff] %v106
    %111 = vst [vmem:[#allocation2 + $0x10] sm:$0xff] %v107
    %112 = vst [vmem:[#allocation2 + $0x18] sm:$0xff] %v108
    // Predicated region
    $region10: #{tpu_custom_call.1} parent=1 // pred_check
      _
    $region11: #{tpu_custom_call.1} parent=1 // pred_check_branch
      %114 = sbr.rel (0) target = $region13
    $region12: #{tpu_custom_call.1} parent=1 // pred_region
      %116 = vsyncadd [#allocation3], 0
      %s117 = sshll.u32 [#allocation2], 4
      %s118 = int_to_ptr.vmem [resolvable:$true] %s117
      %s119 = sshll.u32 %s2, 4
      %s120 = int_to_ptr.hbm [resolvable:$true] %s119
      %125 = dma.vmem_to_hbm [thread:$0]  %s118, 512, %s120, [#allocation3], 256, 256, 16
    $region13: #{tpu_custom_call.1} parent=1 // pred_fallthru
      _
    // Predicated region
    $region14: #{tpu_custom_call.1} parent=1 // pred_check
      _
    $region15: #{tpu_custom_call.1} parent=1 // pred_check_branch
      %127 = sbr.rel (0) target = $region17
    $region16: #{tpu_custom_call.1} parent=1 // pred_region
      %129 = dma.done [#allocation3], 512
    $region17: #{tpu_custom_call.1} parent=1 // pred_fallthru
      _
    %130 = vsyncpa [#allocation3], 1

</llo_original>
